<compile_context>
chip_gen: v6e
topology: v6e:2x2x1
jax: 0.10.0
libtpu: 0.0.40
codegen_flags: <defaults>
</compile_context>

<pallas_src>
import numpy as np
import jax
import jax.numpy as jnp
from jax import lax
from jax.experimental import pallas as pl
from jax.experimental.pallas import tpu as pltpu


def _round_up(n, m):
    return (n + m - 1) // m * m


# ----------------------------------------------------------------------------
# Phase 1: input projection  (M, Dp) @ (Dp, 8*Hp) + bias   (bf16 MXU, f32 acc)
# ----------------------------------------------------------------------------
def proj_kernel(x_ref, w_ref, b_ref, o_ref):
    o_ref[...] = (jnp.dot(x_ref[...], w_ref[...],
                          preferred_element_type=jnp.float32)
                  + b_ref[...])


# ----------------------------------------------------------------------------
# Phase 2: fused bidirectional recurrence over time chunks.
#   grid = (batch_tiles, time_chunks);  batch "parallel", time "arbitrary".
#   Forward direction processes chunk k ascending, backward processes chunk
#   nk-1-k descending, in the same loop, sharing one block-diagonal recurrent
#   matmul.  h/c state for both directions is carried across chunks in VMEM
#   scratch and reset when the time axis restarts (k == 0).
# ----------------------------------------------------------------------------
def recurrence_kernel(lens_ref, xwf_ref, xwb_ref, whh_ref,
                      outf_ref, outb_ref, state_ref):
    k = pl.program_id(1)
    nk = pl.num_programs(1)
    T_blk = xwf_ref.shape[0]
    Hp = outf_ref.shape[2]

    @pl.when(k == 0)
    def _():
        state_ref[...] = jnp.zeros_like(state_ref)

    # Hoisted loop invariants.
    whh = whh_ref[...]                       # (2*Hp, 8*Hp) bf16, block-diagonal
    lens = lens_ref[...]                     # (B_blk, 1) int32

    t0_f = k * T_blk                         # global time offset of fwd chunk
    t0_b = (nk - 1 - k) * T_blk              # global time offset of bwd chunk

    def cell(gates, c_prev):
        # PyTorch gate order: i, f, g, o — each gate block is 128-lane aligned.
        i = jax.nn.sigmoid(gates[:, 0 * Hp:1 * Hp])
        f = jax.nn.sigmoid(gates[:, 1 * Hp:2 * Hp])
        g = jnp.tanh(gates[:, 2 * Hp:3 * Hp])
        o = jax.nn.sigmoid(gates[:, 3 * Hp:4 * Hp])
        c = f * c_prev + i * g
        h = o * jnp.tanh(c)
        return h, c

    def step(tl, carry):
        h_f, c_f, h_b, c_b = carry
        tr = T_blk - 1 - tl                  # backward local time index

        xw_f = xwf_ref[tl]                   # (B_blk, 4*Hp) f32, bias folded in
        xw_b = xwb_ref[tr]

        # One fused recurrent matmul for both directions (block-diagonal whh).
        h_cat = jnp.concatenate([h_f, h_b], axis=1).astype(jnp.bfloat16)
        g_rec = jnp.dot(h_cat, whh, preferred_element_type=jnp.float32)

        gates_f = xw_f + g_rec[:, :4 * Hp]
        gates_b = xw_b + g_rec[:, 4 * Hp:]

        hf_n, cf_n = cell(gates_f, c_f)
        hb_n, cb_n = cell(gates_b, c_b)

        m_f = (t0_f + tl) < lens             # (B_blk, 1) bool
        m_b = (t0_b + tr) < lens

        # Lane-dense (B_blk, Hp) stores into the time-major output blocks.
        outf_ref[pl.ds(tl, 1), :, :] = jnp.where(m_f, hf_n, 0.0)[None]
        outb_ref[pl.ds(tr, 1), :, :] = jnp.where(m_b, hb_n, 0.0)[None]

        # Freeze state on padded timesteps (packed-sequence semantics).
        return (jnp.where(m_f, hf_n, h_f), jnp.where(m_f, cf_n, c_f),
                jnp.where(m_b, hb_n, h_b), jnp.where(m_b, cb_n, c_b))

    h_f, c_f, h_b, c_b = lax.fori_loop(
        0, T_blk, step,
        (state_ref[0], state_ref[1], state_ref[2], state_ref[3]))

    state_ref[0] = h_f
    state_ref[1] = c_f
    state_ref[2] = h_b
    state_ref[3] = c_b


# ----------------------------------------------------------------------------
# Parameter preparation: pad per-gate to 128 lanes, combine directions.
# ----------------------------------------------------------------------------
def _pad_gates_ih(w_ih, H, Hp, D, Dp):
    # (4H, D) torch layout rows [i; f; g; o]  ->  (Dp, 4*Hp), per-gate padded.
    w = w_ih.reshape(4, H, D)
    w = jnp.pad(w, ((0, 0), (0, Hp - H), (0, Dp - D)))
    return jnp.transpose(w, (2, 0, 1)).reshape(Dp, 4 * Hp)


def _pad_gates_hh(w_hh, H, Hp):
    # (4H, H) -> (Hp, 4*Hp), per-gate padded.
    w = w_hh.reshape(4, H, H)
    w = jnp.pad(w, ((0, 0), (0, Hp - H), (0, Hp - H)))
    return jnp.transpose(w, (2, 0, 1)).reshape(Hp, 4 * Hp)


def _pad_gates_b(b, H, Hp):
    b = b.reshape(4, H)
    b = jnp.pad(b, ((0, 0), (0, Hp - H)))
    return b.reshape(4 * Hp)


def prepare_kernel_params(p, H, Hp, D, Dp):
    wih_f = _pad_gates_ih(p["w_ih_f"], H, Hp, D, Dp)
    wih_b = _pad_gates_ih(p["w_ih_b"], H, Hp, D, Dp)
    whh_f = _pad_gates_hh(p["w_hh_f"], H, Hp)
    whh_b = _pad_gates_hh(p["w_hh_b"], H, Hp)
    b_f = _pad_gates_b(p["b_ih_f"] + p["b_hh_f"], H, Hp)
    b_b = _pad_gates_b(p["b_ih_b"] + p["b_hh_b"], H, Hp)

    w_proj = jnp.concatenate([wih_f, wih_b], axis=1).astype(jnp.bfloat16)
    b_proj = jnp.concatenate([b_f, b_b])[None, :].astype(jnp.float32)

    whh_cat = jnp.zeros((2 * Hp, 8 * Hp), jnp.float32)
    whh_cat = whh_cat.at[:Hp, :4 * Hp].set(whh_f)
    whh_cat = whh_cat.at[Hp:, 4 * Hp:].set(whh_b)

    return {"w_proj": w_proj, "b_proj": b_proj,
            "whh_cat": whh_cat.astype(jnp.bfloat16)}


# ----------------------------------------------------------------------------
# Host wrapper: padding, tiling, the two pallas_calls, unpadding.
# ----------------------------------------------------------------------------
def run_pblstm_kernels(x, lens, params):
    B, T, D = x.shape
    H = params["w_hh_f"].shape[1]
    Hp = _round_up(H, 128)
    Dp = _round_up(D, 128)

    # Batch tiling (sublane-aligned; tiles shard across cores on the grid).
    if B <= 64:
        Bp = _round_up(B, 8)
        B_blk = Bp
    else:
        B_blk = 64
        Bp = _round_up(B, 64)

    # Time-chunk size budgeted so the streamed xw blocks (2 dirs x 2 pipeline
    # buffers, f32) stay under ~8 MiB — safe within scoped VMEM on v5e/v6e/v7x.
    budget = 8 * 1024 * 1024
    bytes_per_t = 2 * 2 * B_blk * (4 * Hp) * 4
    T_blk = int(max(1, min(T, 128, budget // bytes_per_t)))
    Tp = _round_up(T, T_blk)

    kp = prepare_kernel_params(params, H, Hp, D, Dp)

    # Pad and lay out x time-major, cast to bf16 for the MXU.
    x_p = jnp.zeros((Bp, Tp, Dp), jnp.float32).at[:B, :T, :D].set(x)
    x_tm = jnp.transpose(x_p, (1, 0, 2)).astype(jnp.bfloat16)     # (Tp, Bp, Dp)
    lens_p = jnp.zeros((Bp, 1), jnp.int32).at[:B, 0].set(lens.astype(jnp.int32))

    # ---------------- Phase 1: tiled, pipelined input projection -------------
    M = Tp * Bp
    m_blk = next((c for c in (512, 256, 128) if M % c == 0), M)
    xw = pl.pallas_call(
        proj_kernel,
        out_shape=jax.ShapeDtypeStruct((M, 8 * Hp), jnp.float32),
        grid_spec=pltpu.PrefetchScalarGridSpec(
            num_scalar_prefetch=0,
            grid=(M // m_blk,),
            in_specs=[
                pl.BlockSpec((m_blk, Dp), lambda i: (i, 0)),
                pl.BlockSpec((Dp, 8 * Hp), lambda i: (0, 0)),
                pl.BlockSpec((1, 8 * Hp), lambda i: (0, 0)),
            ],
            out_specs=pl.BlockSpec((m_blk, 8 * Hp), lambda i: (i, 0))),
        compiler_params=pltpu.CompilerParams(
            dimension_semantics=("parallel",),
            vmem_limit_bytes=32 * 1024 * 1024),
    )(x_tm.reshape(M, Dp), kp["w_proj"], kp["b_proj"])
    xw = xw.reshape(Tp, Bp, 8 * Hp)          # time-major, bias already folded in

    # ---------------- Phase 2: fused bidirectional recurrence ----------------
    nb = Bp // B_blk
    nk = Tp // T_blk

    out_f, out_b = pl.pallas_call(
        recurrence_kernel,
        out_shape=(jax.ShapeDtypeStruct((Tp, Bp, Hp), jnp.float32),
                   jax.ShapeDtypeStruct((Tp, Bp, Hp), jnp.float32)),
        grid_spec=pltpu.PrefetchScalarGridSpec(
            num_scalar_prefetch=0,
            grid=(nb, nk),
            in_specs=[
                pl.BlockSpec((B_blk, 1), lambda b, k: (b, 0)),
                # forward xw: chunk k, lane-block 0 (first 4*Hp columns)
                pl.BlockSpec((T_blk, B_blk, 4 * Hp), lambda b, k: (k, b, 0)),
                # backward xw: chunk nk-1-k, lane-block 1 (last 4*Hp columns)
                pl.BlockSpec((T_blk, B_blk, 4 * Hp),
                             lambda b, k: (nk - 1 - k, b, 1)),
                pl.BlockSpec((2 * Hp, 8 * Hp), lambda b, k: (0, 0)),
            ],
            out_specs=[
                pl.BlockSpec((T_blk, B_blk, Hp), lambda b, k: (k, b, 0)),
                pl.BlockSpec((T_blk, B_blk, Hp),
                             lambda b, k: (nk - 1 - k, b, 0)),
            ],
            scratch_shapes=[pltpu.VMEM((4, B_blk, Hp), jnp.float32)]),
        compiler_params=pltpu.CompilerParams(
            dimension_semantics=("parallel", "arbitrary"),
            vmem_limit_bytes=32 * 1024 * 1024),
    )(lens_p, xw, xw, kp["whh_cat"])

    # Un-pad, back to batch-first, concat directions (lane slices are cheap
    # XLA ops outside the kernel).
    out = jnp.concatenate([out_f[:, :, :H], out_b[:, :, :H]], axis=-1)
    out = jnp.transpose(out, (1, 0, 2))[:B, :T]
    return out


# ----------------------------------------------------------------------------
# pBLSTM wrapper: locked dropout (eval => identity), trunc_reshape, BLSTM.
# ----------------------------------------------------------------------------
def trunc_reshape(x, x_lens):
    B, T, F = x.shape
    if T % 2 != 0:
        x = x[:, :-1, :]
        x_lens = x_lens - 1
    x = x.reshape(B, T // 2, F * 2)
    x_lens = x_lens // 2
    return x, x_lens


def pblstm_forward(x_pad, x_len, params, downsample=True):
    # lockeddropout: identity in eval mode (see TODO at top).
    if downsample:
        x_r, len_r = trunc_reshape(x_pad, x_len)
    else:
        x_r, len_r = x_pad, x_len
    out = run_pblstm_kernels(x_r, len_r, params)
    return out, len_r


# ----------------------------------------------------------------------------
# Deterministic parameter init (PyTorch LSTM shapes, uniform(-1/sqrt(H), k)).
# ----------------------------------------------------------------------------
def init_lstm_params(key, input_size, hidden_size):
    H = hidden_size
    k = 1.0 / np.sqrt(H)
    keys = jax.random.split(key, 8)

    def u(kk, shape):
        return jax.random.uniform(kk, shape, jnp.float32, minval=-k, maxval=k)

    return {
        "w_ih_f": u(keys[0], (4 * H, input_size)),
        "w_hh_f": u(keys[1], (4 * H, H)),
        "b_ih_f": u(keys[2], (4 * H,)),
        "b_hh_f": u(keys[3], (4 * H,)),
        "w_ih_b": u(keys[4], (4 * H, input_size)),
        "w_hh_b": u(keys[5], (4 * H, H)),
        "b_ih_b": u(keys[6], (4 * H,)),
        "b_hh_b": u(keys[7], (4 * H,)),
    }


# ----------------------------------------------------------------------------
# Pure-numpy f32 reference (PyTorch LSTM math, packed-sequence semantics).
# ----------------------------------------------------------------------------
def blstm_reference(x, lens, p):
    x = np.asarray(x, np.float32)
    lens = np.asarray(lens)
    B, T, D = x.shape
    H = np.asarray(p["w_hh_f"]).shape[1]
    out = np.zeros((B, T, 2 * H), np.float32)

    def sigmoid(v):
        return 1.0 / (1.0 + np.exp(-v))

    def run_dir(w_ih, w_hh, b, reverse):
        res = np.zeros((B, T, H), np.float32)
        for bi in range(B):
            L = int(lens[bi])
            h = np.zeros(H, np.float64)
            c = np.zeros(H, np.float64)
            ts = range(L - 1, -1, -1) if reverse else range(L)
            for t in ts:
                g = x[bi, t] @ w_ih.T + h @ w_hh.T + b
                i = sigmoid(g[0:H]); f = sigmoid(g[H:2 * H])
                gg = np.tanh(g[2 * H:3 * H]); o = sigmoid(g[3 * H:4 * H])
                c = f * c + i * gg
                h = o * np.tanh(c)
                res[bi, t] = h
        return res

    out[:, :, :H] = run_dir(np.asarray(p["w_ih_f"]), np.asarray(p["w_hh_f"]),
                            np.asarray(p["b_ih_f"]) + np.asarray(p["b_hh_f"]),
                            False)
    out[:, :, H:] = run_dir(np.asarray(p["w_ih_b"]), np.asarray(p["w_hh_b"]),
                            np.asarray(p["b_ih_b"]) + np.asarray(p["b_hh_b"]),
                            True)
    return out


# ----------------------------------------------------------------------------
if __name__ == "__main__":
    # Small shapes: B=2, T=8, feature=16 => after trunc_reshape: T=4, feat=32.
    B, T, F = 2, 8, 16
    input_size = 2 * F        # pBLSTM(input_size=32, hidden_size=32, downsample)
    hidden_size = 32

    key = jax.random.PRNGKey(0)
    k_x, k_p = jax.random.split(key)

    x_pad = jax.random.normal(k_x, (B, T, F), jnp.float32)
    x_len = jnp.array([8, 6], jnp.int32)
    # zero out padding as pad_packed_sequence would
    t_idx = jnp.arange(T)[None, :, None]
    x_pad = jnp.where(t_idx < x_len[:, None, None], x_pad, 0.0)

    params = init_lstm_params(k_p, input_size, hidden_size)

    out, out_len = pblstm_forward(x_pad, x_len, params, downsample=True)
    out = jax.block_until_ready(out)

    # Sanity check against the f32 numpy reference (kernel matmuls are bf16,
    # so use a bf16-appropriate tolerance).
    x_r, len_r = trunc_reshape(x_pad, x_len)
    ref = blstm_reference(np.asarray(x_r), np.asarray(len_r),
                          {kk: np.asarray(v) for kk, v in params.items()})
    np.testing.assert_allclose(np.asarray(out), ref, rtol=3e-2, atol=3e-2)

    print("KERNEL_OK")
</pallas_src>

<mosaic_0001>
module attributes {stable_mosaic.version = 11 : i64} {
  func.func @proj_kernel(%arg0: i32, %arg1: memref<32x128xbf16, #tpu.memory_space<vmem>>, %arg2: memref<128x1024xbf16, #tpu.memory_space<vmem>>, %arg3: memref<1x1024xf32, #tpu.memory_space<vmem>>, %arg4: memref<32x1024xf32, #tpu.memory_space<vmem>>) attributes {dimension_semantics = [#tpu.dimension_semantics<parallel>], iteration_bounds = array<i64: 1>, scalar_prefetch = 0 : i64, scratch_operands = 0 : i64, tpu.core_type = #tpu.core_type<tc>, window_params = [{transform_indices = @transform_0, window_bounds = array<i64: 32, 128>}, {pipeline_mode = #tpu.pipeline_mode<synchronous>, transform_indices = @transform_1, window_bounds = array<i64: 128, 1024>}, {pipeline_mode = #tpu.pipeline_mode<synchronous>, transform_indices = @transform_2, window_bounds = array<i64: 1, 1024>}, {transform_indices = @transform_3, window_bounds = array<i64: 32, 1024>}]} {
    %c0 = arith.constant 0 : index
    %c0_0 = arith.constant 0 : index
    %0 = vector.load %arg1[%c0, %c0_0] : memref<32x128xbf16, #tpu.memory_space<vmem>>, vector<32x128xbf16>
    %c0_1 = arith.constant 0 : index
    %c0_2 = arith.constant 0 : index
    %1 = vector.load %arg2[%c0_1, %c0_2] : memref<128x1024xbf16, #tpu.memory_space<vmem>>, vector<128x1024xbf16>
    %cst = arith.constant dense<0.000000e+00> : vector<32x1024xf32>
    %2 = tpu.matmul %0, %1, %cst {dimension_numbers = #tpu.dot_dimension_numbers<[1], [0], [0], [1], [0, 0, 1, 1], [], []>} : vector<32x128xbf16>, vector<128x1024xbf16>, vector<32x1024xf32> -> vector<32x1024xf32>
    %c0_3 = arith.constant 0 : index
    %c0_4 = arith.constant 0 : index
    %3 = vector.load %arg3[%c0_3, %c0_4] : memref<1x1024xf32, #tpu.memory_space<vmem>>, vector<1x1024xf32>
    %4 = vector.broadcast %3 : vector<1x1024xf32> to vector<32x1024xf32>
    %5 = arith.addf %2, %4 : vector<32x1024xf32>
    %c0_5 = arith.constant 0 : index
    %c0_6 = arith.constant 0 : index
    %6 = vector.load %arg4[%c0_5, %c0_6] : memref<32x1024xf32, #tpu.memory_space<vmem>>, vector<32x1024xf32>
    tpu.vector_store %arg4[%c0_5, %c0_6], %5 {strides = array<i32>} : memref<32x1024xf32, #tpu.memory_space<vmem>>, vector<32x1024xf32>,
    return
  }
  func.func @transform_0(%arg0: i32) -> (i32, i32) {
    %c0_i32 = arith.constant 0 : i32
    %c0_i32_0 = arith.constant 0 : i32
    return %arg0, %c0_i32 : i32, i32
  }
  func.func @transform_1(%arg0: i32) -> (i32, i32) {
    %c0_i32 = arith.constant 0 : i32
    %c0_i32_0 = arith.constant 0 : i32
    %c0_i32_1 = arith.constant 0 : i32
    return %c0_i32, %c0_i32_0 : i32, i32
  }
  func.func @transform_2(%arg0: i32) -> (i32, i32) {
    %c0_i32 = arith.constant 0 : i32
    %c0_i32_0 = arith.constant 0 : i32
    %c0_i32_1 = arith.constant 0 : i32
    return %c0_i32, %c0_i32_0 : i32, i32
  }
  func.func @transform_3(%arg0: i32) -> (i32, i32) {
    %c0_i32 = arith.constant 0 : i32
    %c0_i32_0 = arith.constant 0 : i32
    return %arg0, %c0_i32 : i32, i32
  }
}

</mosaic_0001>

<llo_original>
// kernel: tpu_custom_call.1
$region0: #{tpu_custom_call.1}
  #allocation0 [shape = 'u32[]', space=smem, size = 0x4, offset = 0x4, fixed_abs, tag = 'smem constant byte address 0x4 - core index']
  #allocation1 [shape = 'u32[144,128]{1,0:T(1,128)}', space=vmem, size = 0x12000, scoped, tag = 'internal scratch']
  %s0 = inlined_call_operand.hbm [shape: bf16[32,128], index: 0, kind: input, shape index: {}]
  %s1 = inlined_call_operand.hbm [shape: bf16[128,1024], index: 1, kind: input, shape index: {}]
  %s2 = inlined_call_operand.hbm [shape: f32[1,1024], index: 2, kind: input, shape index: {}]
  %s3 = inlined_call_operand.hbm [shape: f32[32,1024], index: 3, kind: output, shape index: {}]
  %s4 = sld [smem:[#allocation0]]
  $region34: #{tpu_custom_call.1} parent=0
    _
  %s6 = ssub.s32 1, %s4
  %s7 = scalar_select 0, %s6, %s4
  $region1: #{tpu_custom_call.1} parent=0
    #allocation2 [shape = 'u8[8192]{0}', space=vmem, size = 0x2000, scoped, tag = 'input window, operand 0, single buffered']
    #allocation3 [shape = 's32[1]{0}', space=sflag, size = 0x4, scoped, tag = 'scoped memory for tpu_custom_call.1']
    #allocation4 [shape = 's32[1]{0}', space=sflag, size = 0x4, scoped, tag = 'scoped memory for tpu_custom_call.1']
    #allocation5 [shape = 'u8[262144]{0}', space=vmem, size = 0x40000, scoped, tag = 'input window, operand 1, single buffered']
    #allocation6 [shape = 's32[1]{0}', space=sflag, size = 0x4, scoped, tag = 'scoped memory for tpu_custom_call.1']
    #allocation7 [shape = 'u8[4096]{0}', space=vmem, size = 0x1000, scoped, tag = 'input window, operand 2, single buffered']
    #allocation8 [shape = 'u8[131072]{0}', space=vmem, size = 0x20000, scoped, tag = 'output window, operand 0, single buffered']
    %8 = vsyncpa [#allocation3], 0
    %9 = vsyncpa [#allocation6], 0
    %10 = vsyncpa [#allocation4], 0
    // Predicated region
    $region2: #{tpu_custom_call.1} parent=1 // pred_check
      _
    $region3: #{tpu_custom_call.1} parent=1 // pred_check_branch
      %12 = sbr.rel (0) target = $region5
    $region4: #{tpu_custom_call.1} parent=1 // pred_region
      %s14 = ssub.s32 256, 256
      %15 = vsyncadd [#allocation3], %s14
      %s16 = sshll.u32 [#allocation2], 4
      %s17 = int_to_ptr.vmem [resolvable:$true] %s16
      %22 = dma.hbm_to_vmem [thread:$0]  %s0, 256, %s17, [#allocation3], 64, 64, 4
    $region5: #{tpu_custom_call.1} parent=1 // pred_fallthru
      _
    // Predicated region
    $region6: #{tpu_custom_call.1} parent=1 // pred_check
      _
    $region7: #{tpu_custom_call.1} parent=1 // pred_check_branch
      %24 = sbr.rel (0) target = $region9
    $region8: #{tpu_custom_call.1} parent=1 // pred_region
      %s26 = ssub.s32 8192, 8192
      %27 = vsyncadd [#allocation6], %s26
      %s28 = sshll.u32 [#allocation5], 4
      %s29 = int_to_ptr.vmem [resolvable:$true] %s28
      %34 = dma.hbm_to_vmem [thread:$0]  %s1, 8192, %s29, [#allocation6], 512, 512, 32
    $region9: #{tpu_custom_call.1} parent=1 // pred_fallthru
      _
    // Predicated region
    $region10: #{tpu_custom_call.1} parent=1 // pred_check
      _
    $region11: #{tpu_custom_call.1} parent=1 // pred_check_branch
      %36 = sbr.rel (0) target = $region13
    $region12: #{tpu_custom_call.1} parent=1 // pred_region
      %s38 = ssub.s32 128, 128
      %39 = vsyncadd [#allocation6], %s38
      %s41 = sshll.u32 [#allocation7], 4
      %s42 = int_to_ptr.vmem [resolvable:$true] %s41
      %44 = dma.hbm_to_vmem [thread:$0]  %s2, 128, %s42, [#allocation6]
    $region13: #{tpu_custom_call.1} parent=1 // pred_fallthru
      _
    // Predicated region
    $region14: #{tpu_custom_call.1} parent=1 // pred_check
      _
    $region15: #{tpu_custom_call.1} parent=1 // pred_check_branch
      %46 = sbr.rel (0) target = $region17
    $region16: #{tpu_custom_call.1} parent=1 // pred_region
      %47 = dma.done [#allocation3], 256
    $region17: #{tpu_custom_call.1} parent=1 // pred_fallthru
      _
    // Predicated region
    $region18: #{tpu_custom_call.1} parent=1 // pred_check
      _
    $region19: #{tpu_custom_call.1} parent=1 // pred_check_branch
      %49 = sbr.rel (0) target = $region21
    $region20: #{tpu_custom_call.1} parent=1 // pred_region
      %50 = dma.done [#allocation6], 8192
    $region21: #{tpu_custom_call.1} parent=1 // pred_fallthru
      _
    // Predicated region
    $region22: #{tpu_custom_call.1} parent=1 // pred_check
      _
    $region23: #{tpu_custom_call.1} parent=1 // pred_check_branch
      %52 = sbr.rel (0) target = $region25
    $region24: #{tpu_custom_call.1} parent=1 // pred_region
      %53 = dma.done [#allocation6], 128
    $region25: #{tpu_custom_call.1} parent=1 // pred_fallthru
      _
    %v55 = vld [vmem:[#allocation2] sm:$0xf]
    %v56 = vld [vmem:[#allocation2 + $0x4] sm:$0xf]
    %v57 = vld [vmem:[#allocation2 + $0x8] sm:$0xf]
    %v58 = vld [vmem:[#allocation2 + $0xc] sm:$0xf]
    %v59 = vld [vmem:[#allocation5] sm:$0xff]
    %v60 = vld [vmem:[#allocation5 + $0x8] sm:$0xff]
    %v61 = vld [vmem:[#allocation5 + $0x10] sm:$0xff]
    %v62 = vld [vmem:[#allocation5 + $0x18] sm:$0xff]
    %v63 = vld [vmem:[#allocation5 + $0x20] sm:$0xff]
    %v64 = vld [vmem:[#allocation5 + $0x28] sm:$0xff]
    %v65 = vld [vmem:[#allocation5 + $0x30] sm:$0xff]
    %v66 = vld [vmem:[#allocation5 + $0x38] sm:$0xff]
    %v67 = vld [vmem:[#allocation5 + $0x40] sm:$0xff]
    %v68 = vld [vmem:[#allocation5 + $0x48] sm:$0xff]
    %v69 = vld [vmem:[#allocation5 + $0x50] sm:$0xff]
    %v70 = vld [vmem:[#allocation5 + $0x58] sm:$0xff]
    %v71 = vld [vmem:[#allocation5 + $0x60] sm:$0xff]
    %v72 = vld [vmem:[#allocation5 + $0x68] sm:$0xff]
    %v73 = vld [vmem:[#allocation5 + $0x70] sm:$0xff]
    %v74 = vld [vmem:[#allocation5 + $0x78] sm:$0xff]
    %v75 = vld [vmem:[#allocation5 + $0x80] sm:$0xff]
    %v76 = vld [vmem:[#allocation5 + $0x88] sm:$0xff]
    %v77 = vld [vmem:[#allocation5 + $0x90] sm:$0xff]
    %v78 = vld [vmem:[#allocation5 + $0x98] sm:$0xff]
    %v79 = vld [vmem:[#allocation5 + $0xa0] sm:$0xff]
    %v80 = vld [vmem:[#allocation5 + $0xa8] sm:$0xff]
    %v81 = vld [vmem:[#allocation5 + $0xb0] sm:$0xff]
    %v82 = vld [vmem:[#allocation5 + $0xb8] sm:$0xff]
    %v83 = vld [vmem:[#allocation5 + $0xc0] sm:$0xff]
    %v84 = vld [vmem:[#allocation5 + $0xc8] sm:$0xff]
    %v85 = vld [vmem:[#allocation5 + $0xd0] sm:$0xff]
    %v86 = vld [vmem:[#allocation5 + $0xd8] sm:$0xff]
    %v87 = vld [vmem:[#allocation5 + $0xe0] sm:$0xff]
    %v88 = vld [vmem:[#allocation5 + $0xe8] sm:$0xff]
    %v89 = vld [vmem:[#allocation5 + $0xf0] sm:$0xff]
    %v90 = vld [vmem:[#allocation5 + $0xf8] sm:$0xff]
    %v91 = vld [vmem:[#allocation5 + $0x100] sm:$0xff]
    %v92 = vld [vmem:[#allocation5 + $0x108] sm:$0xff]
    %v93 = vld [vmem:[#allocation5 + $0x110] sm:$0xff]
    %v94 = vld [vmem:[#allocation5 + $0x118] sm:$0xff]
    %v95 = vld [vmem:[#allocation5 + $0x120] sm:$0xff]
    %v96 = vld [vmem:[#allocation5 + $0x128] sm:$0xff]
    %v97 = vld [vmem:[#allocation5 + $0x130] sm:$0xff]
    %v98 = vld [vmem:[#allocation5 + $0x138] sm:$0xff]
    %v99 = vld [vmem:[#allocation5 + $0x140] sm:$0xff]
    %v100 = vld [vmem:[#allocation5 + $0x148] sm:$0xff]
    %v101 = vld [vmem:[#allocation5 + $0x150] sm:$0xff]
    %v102 = vld [vmem:[#allocation5 + $0x158] sm:$0xff]
    %v103 = vld [vmem:[#allocation5 + $0x160] sm:$0xff]
    %v104 = vld [vmem:[#allocation5 + $0x168] sm:$0xff]
    %v105 = vld [vmem:[#allocation5 + $0x170] sm:$0xff]
    %v106 = vld [vmem:[#allocation5 + $0x178] sm:$0xff]
    %v107 = vld [vmem:[#allocation5 + $0x180] sm:$0xff]
    %v108 = vld [vmem:[#allocation5 + $0x188] sm:$0xff]
    %v109 = vld [vmem:[#allocation5 + $0x190] sm:$0xff]
    %v110 = vld [vmem:[#allocation5 + $0x198] sm:$0xff]
    %v111 = vld [vmem:[#allocation5 + $0x1a0] sm:$0xff]
    %v112 = vld [vmem:[#allocation5 + $0x1a8] sm:$0xff]
    %v113 = vld [vmem:[#allocation5 + $0x1b0] sm:$0xff]
    %v114 = vld [vmem:[#allocation5 + $0x1b8] sm:$0xff]
    %v115 = vld [vmem:[#allocation5 + $0x1c0] sm:$0xff]
    %v116 = vld [vmem:[#allocation5 + $0x1c8] sm:$0xff]
    %v117 = vld [vmem:[#allocation5 + $0x1d0] sm:$0xff]
    %v118 = vld [vmem:[#allocation5 + $0x1d8] sm:$0xff]
    %v119 = vld [vmem:[#allocation5 + $0x1e0] sm:$0xff]
    %v120 = vld [vmem:[#allocation5 + $0x1e8] sm:$0xff]
    %v121 = vld [vmem:[#allocation5 + $0x1f0] sm:$0xff]
    %v122 = vld [vmem:[#allocation5 + $0x1f8] sm:$0xff]
    %v123 = vld [vmem:[#allocation7] sm:$0xff]
    %v125 = vlaneseq
    %v126 = vshrl.u32 %v125, 7
    %v127 = vsub.s32 0, %v126
    %v128 = vrot.slane %v123, %v127
    %v129 = vlaneseq
    %v130 = vshrl.u32 %v129, 7
    %v131 = vsub.s32 1, %v130
    %v132 = vrot.slane %v123, %v131
    %v133 = vlaneseq
    %v134 = vshrl.u32 %v133, 7
    %v135 = vsub.s32 2, %v134
    %v136 = vrot.slane %v123, %v135
    %v137 = vlaneseq
    %v138 = vshrl.u32 %v137, 7
    %v139 = vsub.s32 3, %v138
    %v140 = vrot.slane %v123, %v139
    %v141 = vlaneseq
    %v142 = vshrl.u32 %v141, 7
    %v143 = vsub.s32 4, %v142
    %v144 = vrot.slane %v123, %v143
    %v145 = vlaneseq
    %v146 = vshrl.u32 %v145, 7
    %v147 = vsub.s32 5, %v146
    %v148 = vrot.slane %v123, %v147
    %v149 = vlaneseq
    %v150 = vshrl.u32 %v149, 7
    %v151 = vsub.s32 6, %v150
    %v152 = vrot.slane %v123, %v151
    %v153 = vlaneseq
    %v154 = vshrl.u32 %v153, 7
    %v155 = vsub.s32 7, %v154
    %v156 = vrot.slane %v123, %v155
    %v169 = vunpack.c.l.b16 %v55
    %v170 = vunpack.c.l.b16 %v56
    %v171 = vunpack.c.l.b16 %v57
    %v172 = vunpack.c.l.b16 %v58
    %v173 = vpack.c.b16 %v170, %v169
    %v174 = vpack.c.b16 %v172, %v171
    %v241 = vunpack.c.l.b16 %v59
    %v242 = vunpack.c.h.b16 %v59
    %v243 = vunpack.c.l.b16 %v60
    %v244 = vunpack.c.h.b16 %v60
    %v245 = vunpack.c.l.b16 %v61
    %v246 = vunpack.c.h.b16 %v61
    %v247 = vunpack.c.l.b16 %v62
    %v248 = vunpack.c.h.b16 %v62
    %v249 = vunpack.c.l.b16 %v63
    %v250 = vunpack.c.h.b16 %v63
    %v251 = vunpack.c.l.b16 %v64
    %v252 = vunpack.c.h.b16 %v64
    %v253 = vunpack.c.l.b16 %v65
    %v254 = vunpack.c.h.b16 %v65
    %v255 = vunpack.c.l.b16 %v66
    %v256 = vunpack.c.h.b16 %v66
    %v257 = vunpack.c.l.b16 %v67
    %v258 = vunpack.c.h.b16 %v67
    %v259 = vunpack.c.l.b16 %v68
    %v260 = vunpack.c.h.b16 %v68
    %v261 = vunpack.c.l.b16 %v69
    %v262 = vunpack.c.h.b16 %v69
    %v263 = vunpack.c.l.b16 %v70
    %v264 = vunpack.c.h.b16 %v70
    %v265 = vunpack.c.l.b16 %v71
    %v266 = vunpack.c.h.b16 %v71
    %v267 = vunpack.c.l.b16 %v72
    %v268 = vunpack.c.h.b16 %v72
    %v269 = vunpack.c.l.b16 %v73
    %v270 = vunpack.c.h.b16 %v73
    %v271 = vunpack.c.l.b16 %v74
    %v272 = vunpack.c.h.b16 %v74
    %v273 = vunpack.c.l.b16 %v75
    %v274 = vunpack.c.h.b16 %v75
    %v275 = vunpack.c.l.b16 %v76
    %v276 = vunpack.c.h.b16 %v76
    %v277 = vunpack.c.l.b16 %v77
    %v278 = vunpack.c.h.b16 %v77
    %v279 = vunpack.c.l.b16 %v78
    %v280 = vunpack.c.h.b16 %v78
    %v281 = vunpack.c.l.b16 %v79
    %v282 = vunpack.c.h.b16 %v79
    %v283 = vunpack.c.l.b16 %v80
    %v284 = vunpack.c.h.b16 %v80
    %v285 = vunpack.c.l.b16 %v81
    %v286 = vunpack.c.h.b16 %v81
    %v287 = vunpack.c.l.b16 %v82
    %v288 = vunpack.c.h.b16 %v82
    %v289 = vunpack.c.l.b16 %v83
    %v290 = vunpack.c.h.b16 %v83
    %v291 = vunpack.c.l.b16 %v84
    %v292 = vunpack.c.h.b16 %v84
    %v293 = vunpack.c.l.b16 %v85
    %v294 = vunpack.c.h.b16 %v85
    %v295 = vunpack.c.l.b16 %v86
    %v296 = vunpack.c.h.b16 %v86
    %v297 = vunpack.c.l.b16 %v87
    %v298 = vunpack.c.h.b16 %v87
    %v299 = vunpack.c.l.b16 %v88
    %v300 = vunpack.c.h.b16 %v88
    %v301 = vunpack.c.l.b16 %v89
    %v302 = vunpack.c.h.b16 %v89
    %v303 = vunpack.c.l.b16 %v90
    %v304 = vunpack.c.h.b16 %v90
    %v305 = vunpack.c.l.b16 %v91
    %v306 = vunpack.c.h.b16 %v91
    %v307 = vunpack.c.l.b16 %v92
    %v308 = vunpack.c.h.b16 %v92
    %v309 = vunpack.c.l.b16 %v93
    %v310 = vunpack.c.h.b16 %v93
    %v311 = vunpack.c.l.b16 %v94
    %v312 = vunpack.c.h.b16 %v94
    %v313 = vunpack.c.l.b16 %v95
    %v314 = vunpack.c.h.b16 %v95
    %v315 = vunpack.c.l.b16 %v96
    %v316 = vunpack.c.h.b16 %v96
    %v317 = vunpack.c.l.b16 %v97
    %v318 = vunpack.c.h.b16 %v97
    %v319 = vunpack.c.l.b16 %v98
    %v320 = vunpack.c.h.b16 %v98
    %v321 = vunpack.c.l.b16 %v99
    %v322 = vunpack.c.h.b16 %v99
    %v323 = vunpack.c.l.b16 %v100
    %v324 = vunpack.c.h.b16 %v100
    %v325 = vunpack.c.l.b16 %v101
    %v326 = vunpack.c.h.b16 %v101
    %v327 = vunpack.c.l.b16 %v102
    %v328 = vunpack.c.h.b16 %v102
    %v329 = vunpack.c.l.b16 %v103
    %v330 = vunpack.c.h.b16 %v103
    %v331 = vunpack.c.l.b16 %v104
    %v332 = vunpack.c.h.b16 %v104
    %v333 = vunpack.c.l.b16 %v105
    %v334 = vunpack.c.h.b16 %v105
    %v335 = vunpack.c.l.b16 %v106
    %v336 = vunpack.c.h.b16 %v106
    %v337 = vunpack.c.l.b16 %v107
    %v338 = vunpack.c.h.b16 %v107
    %v339 = vunpack.c.l.b16 %v108
    %v340 = vunpack.c.h.b16 %v108
    %v341 = vunpack.c.l.b16 %v109
    %v342 = vunpack.c.h.b16 %v109
    %v343 = vunpack.c.l.b16 %v110
    %v344 = vunpack.c.h.b16 %v110
    %v345 = vunpack.c.l.b16 %v111
    %v346 = vunpack.c.h.b16 %v111
    %v347 = vunpack.c.l.b16 %v112
    %v348 = vunpack.c.h.b16 %v112
    %v349 = vunpack.c.l.b16 %v113
    %v350 = vunpack.c.h.b16 %v113
    %v351 = vunpack.c.l.b16 %v114
    %v352 = vunpack.c.h.b16 %v114
    %v353 = vunpack.c.l.b16 %v115
    %v354 = vunpack.c.h.b16 %v115
    %v355 = vunpack.c.l.b16 %v116
    %v356 = vunpack.c.h.b16 %v116
    %v357 = vunpack.c.l.b16 %v117
    %v358 = vunpack.c.h.b16 %v117
    %v359 = vunpack.c.l.b16 %v118
    %v360 = vunpack.c.h.b16 %v118
    %v361 = vunpack.c.l.b16 %v119
    %v362 = vunpack.c.h.b16 %v119
    %v363 = vunpack.c.l.b16 %v120
    %v364 = vunpack.c.h.b16 %v120
    %v365 = vunpack.c.l.b16 %v121
    %v366 = vunpack.c.h.b16 %v121
    %v367 = vunpack.c.l.b16 %v122
    %v368 = vunpack.c.h.b16 %v122
    %v369 = vpack.c.b16 %v249, %v241
    %v370 = vpack.c.b16 %v250, %v242
    %v371 = vpack.c.b16 %v251, %v243
    %v372 = vpack.c.b16 %v252, %v244
    %v373 = vpack.c.b16 %v253, %v245
    %v374 = vpack.c.b16 %v254, %v246
    %v375 = vpack.c.b16 %v255, %v247
    %v376 = vpack.c.b16 %v256, %v248
    %v377 = vpack.c.b16 %v265, %v257
    %v378 = vpack.c.b16 %v266, %v258
    %v379 = vpack.c.b16 %v267, %v259
    %v380 = vpack.c.b16 %v268, %v260
    %v381 = vpack.c.b16 %v269, %v261
    %v382 = vpack.c.b16 %v270, %v262
    %v383 = vpack.c.b16 %v271, %v263
    %v384 = vpack.c.b16 %v272, %v264
    %v385 = vpack.c.b16 %v281, %v273
    %v386 = vpack.c.b16 %v282, %v274
    %v387 = vpack.c.b16 %v283, %v275
    %v388 = vpack.c.b16 %v284, %v276
    %v389 = vpack.c.b16 %v285, %v277
    %v390 = vpack.c.b16 %v286, %v278
    %v391 = vpack.c.b16 %v287, %v279
    %v392 = vpack.c.b16 %v288, %v280
    %v393 = vpack.c.b16 %v297, %v289
    %v394 = vpack.c.b16 %v298, %v290
    %v395 = vpack.c.b16 %v299, %v291
    %v396 = vpack.c.b16 %v300, %v292
    %v397 = vpack.c.b16 %v301, %v293
    %v398 = vpack.c.b16 %v302, %v294
    %v399 = vpack.c.b16 %v303, %v295
    %v400 = vpack.c.b16 %v304, %v296
    %v401 = vpack.c.b16 %v313, %v305
    %v402 = vpack.c.b16 %v314, %v306
    %v403 = vpack.c.b16 %v315, %v307
    %v404 = vpack.c.b16 %v316, %v308
    %v405 = vpack.c.b16 %v317, %v309
    %v406 = vpack.c.b16 %v318, %v310
    %v407 = vpack.c.b16 %v319, %v311
    %v408 = vpack.c.b16 %v320, %v312
    %v409 = vpack.c.b16 %v329, %v321
    %v410 = vpack.c.b16 %v330, %v322
    %v411 = vpack.c.b16 %v331, %v323
    %v412 = vpack.c.b16 %v332, %v324
    %v413 = vpack.c.b16 %v333, %v325
    %v414 = vpack.c.b16 %v334, %v326
    %v415 = vpack.c.b16 %v335, %v327
    %v416 = vpack.c.b16 %v336, %v328
    %v417 = vpack.c.b16 %v345, %v337
    %v418 = vpack.c.b16 %v346, %v338
    %v419 = vpack.c.b16 %v347, %v339
    %v420 = vpack.c.b16 %v348, %v340
    %v421 = vpack.c.b16 %v349, %v341
    %v422 = vpack.c.b16 %v350, %v342
    %v423 = vpack.c.b16 %v351, %v343
    %v424 = vpack.c.b16 %v352, %v344
    %v425 = vpack.c.b16 %v361, %v353
    %v426 = vpack.c.b16 %v362, %v354
    %v427 = vpack.c.b16 %v363, %v355
    %v428 = vpack.c.b16 %v364, %v356
    %v429 = vpack.c.b16 %v365, %v357
    %v430 = vpack.c.b16 %v366, %v358
    %v431 = vpack.c.b16 %v367, %v359
    %v432 = vpack.c.b16 %v368, %v360
    %497 = vmatprep.subr.bf16.mxu0 %v426
    %498 = vmatpush1.bf16.msra.mxu0 %v425
    %499 = vmatprep.subr.bf16.mxu0 %v418
    %500 = vmatpush1.bf16.msra.mxu0 %v417
    %501 = vmatprep.subr.bf16.mxu0 %v410
    %502 = vmatpush1.bf16.msra.mxu0 %v409
    %503 = vmatprep.subr.bf16.mxu0 %v402
    %504 = vmatpush1.bf16.msra.mxu0 %v401
    %505 = vmatprep.subr.bf16.mxu0 %v394
    %506 = vmatpush1.bf16.msra.mxu0 %v393
    %507 = vmatprep.subr.bf16.mxu0 %v386
    %508 = vmatpush1.bf16.msra.mxu0 %v385
    %509 = vmatprep.subr.bf16.mxu0 %v378
    %510 = vmatpush1.bf16.msra.mxu0 %v377
    %511 = vmatprep.subr.bf16.mxu0 %v370
    %512 = vmatpush1.bf16.msra.mxu0 %v369
    %513 = vmatprep.subr.bf16.mxu0 0
    %514 = vmatpush2.bf16.msra.mxu0 0
    %515 = vmatprep.subr.bf16.mxu0 0
    %516 = vmatpush2.bf16.msra.mxu0 0
    %517 = vmatprep.subr.bf16.mxu0 0
    %518 = vmatpush2.bf16.msra.mxu0 0
    %519 = vmatprep.subr.bf16.mxu0 0
    %520 = vmatpush2.bf16.msra.mxu0 0
    %521 = vmatprep.subr.bf16.mxu0 0
    %522 = vmatpush2.bf16.msra.mxu0 0
    %523 = vmatprep.subr.bf16.mxu0 0
    %524 = vmatpush2.bf16.msra.mxu0 0
    %525 = vmatprep.subr.bf16.mxu0 0
    %526 = vmatpush2.bf16.msra.mxu0 0
    %527 = vmatprep.subr.bf16.mxu0 0
    %528 = vmatpush2.bf16.msra.mxu0 0
    %529 = vmatprep.mubr.bf16.mxu0 0
    %530 = vmatmul.mubr.bf16.gmra.mxu0 %v173
    %v531 = vpop.f32.mrf.mxu0
    %v532 = vadd.f32 %v128, %v531
    %v533 = vpop.f32.mrf.mxu0
    %v534 = vadd.f32 %v132, %v533
    %v535 = vpop.f32.mrf.mxu0
    %v536 = vadd.f32 %v128, %v535
    %v537 = vpop.f32.mrf.mxu0
    %v538 = vadd.f32 %v132, %v537
    %539 = vmatprep.mubr.bf16.mxu0 0
    %540 = vmatmul.mubr.bf16.gmra.mxu0 %v174
    %v541 = vpop.f32.mrf.mxu0
    %v542 = vadd.f32 %v128, %v541
    %v543 = vpop.f32.mrf.mxu0
    %v544 = vadd.f32 %v132, %v543
    %v545 = vpop.f32.mrf.mxu0
    %v546 = vadd.f32 %v128, %v545
    %v547 = vpop.f32.mrf.mxu0
    %v548 = vadd.f32 %v132, %v547
    %549 = vdwg.mxu0
    %550 = vmatprep.subr.bf16.mxu0 %v428
    %551 = vmatpush1.bf16.msra.mxu0 %v427
    %552 = vmatprep.subr.bf16.mxu0 %v420
    %553 = vmatpush1.bf16.msra.mxu0 %v419
    %554 = vmatprep.subr.bf16.mxu0 %v412
    %555 = vmatpush1.bf16.msra.mxu0 %v411
    %556 = vmatprep.subr.bf16.mxu0 %v404
    %557 = vmatpush1.bf16.msra.mxu0 %v403
    %558 = vmatprep.subr.bf16.mxu0 %v396
    %559 = vmatpush1.bf16.msra.mxu0 %v395
    %560 = vmatprep.subr.bf16.mxu0 %v388
    %561 = vmatpush1.bf16.msra.mxu0 %v387
    %562 = vmatprep.subr.bf16.mxu0 %v380
    %563 = vmatpush1.bf16.msra.mxu0 %v379
    %564 = vmatprep.subr.bf16.mxu0 %v372
    %565 = vmatpush1.bf16.msra.mxu0 %v371
    %566 = vmatprep.subr.bf16.mxu0 0
    %567 = vmatpush2.bf16.msra.mxu0 0
    %568 = vmatprep.subr.bf16.mxu0 0
    %569 = vmatpush2.bf16.msra.mxu0 0
    %570 = vmatprep.subr.bf16.mxu0 0
    %571 = vmatpush2.bf16.msra.mxu0 0
    %572 = vmatprep.subr.bf16.mxu0 0
    %573 = vmatpush2.bf16.msra.mxu0 0
    %574 = vmatprep.subr.bf16.mxu0 0
    %575 = vmatpush2.bf16.msra.mxu0 0
    %576 = vmatprep.subr.bf16.mxu0 0
    %577 = vmatpush2.bf16.msra.mxu0 0
    %578 = vmatprep.subr.bf16.mxu0 0
    %579 = vmatpush2.bf16.msra.mxu0 0
    %580 = vmatprep.subr.bf16.mxu0 0
    %581 = vmatpush2.bf16.msra.mxu0 0
    %582 = vmatprep.mubr.bf16.mxu0 0
    %583 = vmatmul.mubr.bf16.gmra.mxu0 %v173
    %v584 = vpop.f32.mrf.mxu0
    %v585 = vadd.f32 %v136, %v584
    %v586 = vpop.f32.mrf.mxu0
    %v587 = vadd.f32 %v140, %v586
    %v588 = vpop.f32.mrf.mxu0
    %v589 = vadd.f32 %v136, %v588
    %v590 = vpop.f32.mrf.mxu0
    %v591 = vadd.f32 %v140, %v590
    %592 = vmatprep.mubr.bf16.mxu0 0
    %593 = vmatmul.mubr.bf16.gmra.mxu0 %v174
    %v594 = vpop.f32.mrf.mxu0
    %v595 = vadd.f32 %v136, %v594
    %v596 = vpop.f32.mrf.mxu0
    %v597 = vadd.f32 %v140, %v596
    %v598 = vpop.f32.mrf.mxu0
    %v599 = vadd.f32 %v136, %v598
    %v600 = vpop.f32.mrf.mxu0
    %v601 = vadd.f32 %v140, %v600
    %602 = vdwg.mxu0
    %603 = vmatprep.subr.bf16.mxu0 %v430
    %604 = vmatpush1.bf16.msra.mxu0 %v429
    %605 = vmatprep.subr.bf16.mxu0 %v422
    %606 = vmatpush1.bf16.msra.mxu0 %v421
    %607 = vmatprep.subr.bf16.mxu0 %v414
    %608 = vmatpush1.bf16.msra.mxu0 %v413
    %609 = vmatprep.subr.bf16.mxu0 %v406
    %610 = vmatpush1.bf16.msra.mxu0 %v405
    %611 = vmatprep.subr.bf16.mxu0 %v398
    %612 = vmatpush1.bf16.msra.mxu0 %v397
    %613 = vmatprep.subr.bf16.mxu0 %v390
    %614 = vmatpush1.bf16.msra.mxu0 %v389
    %615 = vmatprep.subr.bf16.mxu0 %v382
    %616 = vmatpush1.bf16.msra.mxu0 %v381
    %617 = vmatprep.subr.bf16.mxu0 %v374
    %618 = vmatpush1.bf16.msra.mxu0 %v373
    %619 = vmatprep.subr.bf16.mxu0 0
    %620 = vmatpush2.bf16.msra.mxu0 0
    %621 = vmatprep.subr.bf16.mxu0 0
    %622 = vmatpush2.bf16.msra.mxu0 0
    %623 = vmatprep.subr.bf16.mxu0 0
    %624 = vmatpush2.bf16.msra.mxu0 0
    %625 = vmatprep.subr.bf16.mxu0 0
    %626 = vmatpush2.bf16.msra.mxu0 0
    %627 = vmatprep.subr.bf16.mxu0 0
    %628 = vmatpush2.bf16.msra.mxu0 0
    %629 = vmatprep.subr.bf16.mxu0 0
    %630 = vmatpush2.bf16.msra.mxu0 0
    %631 = vmatprep.subr.bf16.mxu0 0
    %632 = vmatpush2.bf16.msra.mxu0 0
    %633 = vmatprep.subr.bf16.mxu0 0
    %634 = vmatpush2.bf16.msra.mxu0 0
    %635 = vmatprep.mubr.bf16.mxu0 0
    %636 = vmatmul.mubr.bf16.gmra.mxu0 %v173
    %v637 = vpop.f32.mrf.mxu0
    %v638 = vadd.f32 %v144, %v637
    %v639 = vpop.f32.mrf.mxu0
    %v640 = vadd.f32 %v148, %v639
    %v641 = vpop.f32.mrf.mxu0
    %v642 = vadd.f32 %v144, %v641
    %v643 = vpop.f32.mrf.mxu0
    %v644 = vadd.f32 %v148, %v643
    %645 = vmatprep.mubr.bf16.mxu0 0
    %646 = vmatmul.mubr.bf16.gmra.mxu0 %v174
    %v647 = vpop.f32.mrf.mxu0
    %v648 = vadd.f32 %v144, %v647
    %v649 = vpop.f32.mrf.mxu0
    %v650 = vadd.f32 %v148, %v649
    %v651 = vpop.f32.mrf.mxu0
    %v652 = vadd.f32 %v144, %v651
    %v653 = vpop.f32.mrf.mxu0
    %v654 = vadd.f32 %v148, %v653
    %655 = vdwg.mxu0
    %656 = vmatprep.subr.bf16.mxu0 %v432
    %657 = vmatpush1.bf16.msra.mxu0 %v431
    %658 = vmatprep.subr.bf16.mxu0 %v424
    %659 = vmatpush1.bf16.msra.mxu0 %v423
    %660 = vmatprep.subr.bf16.mxu0 %v416
    %661 = vmatpush1.bf16.msra.mxu0 %v415
    %662 = vmatprep.subr.bf16.mxu0 %v408
    %663 = vmatpush1.bf16.msra.mxu0 %v407
    %664 = vmatprep.subr.bf16.mxu0 %v400
    %665 = vmatpush1.bf16.msra.mxu0 %v399
    %666 = vmatprep.subr.bf16.mxu0 %v392
    %667 = vmatpush1.bf16.msra.mxu0 %v391
    %668 = vmatprep.subr.bf16.mxu0 %v384
    %669 = vmatpush1.bf16.msra.mxu0 %v383
    %670 = vmatprep.subr.bf16.mxu0 %v376
    %671 = vmatpush1.bf16.msra.mxu0 %v375
    %672 = vmatprep.subr.bf16.mxu0 0
    %673 = vmatpush2.bf16.msra.mxu0 0
    %674 = vmatprep.subr.bf16.mxu0 0
    %675 = vmatpush2.bf16.msra.mxu0 0
    %676 = vmatprep.subr.bf16.mxu0 0
    %677 = vmatpush2.bf16.msra.mxu0 0
    %678 = vmatprep.subr.bf16.mxu0 0
    %679 = vmatpush2.bf16.msra.mxu0 0
    %680 = vmatprep.subr.bf16.mxu0 0
    %681 = vmatpush2.bf16.msra.mxu0 0
    %682 = vmatprep.subr.bf16.mxu0 0
    %683 = vmatpush2.bf16.msra.mxu0 0
    %684 = vmatprep.subr.bf16.mxu0 0
    %685 = vmatpush2.bf16.msra.mxu0 0
    %686 = vmatprep.subr.bf16.mxu0 0
    %687 = vmatpush2.bf16.msra.mxu0 0
    %688 = vmatprep.mubr.bf16.mxu0 0
    %689 = vmatmul.mubr.bf16.gmra.mxu0 %v173
    %v690 = vpop.f32.mrf.mxu0
    %v691 = vadd.f32 %v152, %v690
    %v692 = vpop.f32.mrf.mxu0
    %v693 = vadd.f32 %v156, %v692
    %v694 = vpop.f32.mrf.mxu0
    %v695 = vadd.f32 %v152, %v694
    %v696 = vpop.f32.mrf.mxu0
    %v697 = vadd.f32 %v156, %v696
    %698 = vmatprep.mubr.bf16.mxu0 0
    %699 = vmatmul.mubr.bf16.gmra.mxu0 %v174
    %v700 = vpop.f32.mrf.mxu0
    %v701 = vadd.f32 %v152, %v700
    %v702 = vpop.f32.mrf.mxu0
    %v703 = vadd.f32 %v156, %v702
    %v704 = vpop.f32.mrf.mxu0
    %v705 = vadd.f32 %v152, %v704
    %v706 = vpop.f32.mrf.mxu0
    %v707 = vadd.f32 %v156, %v706
    %708 = vdwg.mxu0
    %709 = vst [vmem:[#allocation8] sm:$0xff] %v532
    %710 = vst [vmem:[#allocation8 + $0x8] sm:$0xff] %v534
    %711 = vst [vmem:[#allocation8 + $0x10] sm:$0xff] %v585
    %712 = vst [vmem:[#allocation8 + $0x18] sm:$0xff] %v587
    %713 = vst [vmem:[#allocation8 + $0x20] sm:$0xff] %v638
    %714 = vst [vmem:[#allocation8 + $0x28] sm:$0xff] %v640
    %715 = vst [vmem:[#allocation8 + $0x30] sm:$0xff] %v691
    %716 = vst [vmem:[#allocation8 + $0x38] sm:$0xff] %v693
    %717 = vst [vmem:[#allocation8 + $0x40] sm:$0xff] %v536
    %718 = vst [vmem:[#allocation8 + $0x48] sm:$0xff] %v538
    %719 = vst [vmem:[#allocation8 + $0x50] sm:$0xff] %v589
    %720 = vst [vmem:[#allocation8 + $0x58] sm:$0xff] %v591
    %721 = vst [vmem:[#allocation8 + $0x60] sm:$0xff] %v642
    %722 = vst [vmem:[#allocation8 + $0x68] sm:$0xff] %v644
    %723 = vst [vmem:[#allocation8 + $0x70] sm:$0xff] %v695
    %724 = vst [vmem:[#allocation8 + $0x78] sm:$0xff] %v697
    %725 = vst [vmem:[#allocation8 + $0x80] sm:$0xff] %v542
    %726 = vst [vmem:[#allocation8 + $0x88] sm:$0xff] %v544
    %727 = vst [vmem:[#allocation8 + $0x90] sm:$0xff] %v595
    %728 = vst [vmem:[#allocation8 + $0x98] sm:$0xff] %v597
    %729 = vst [vmem:[#allocation8 + $0xa0] sm:$0xff] %v648
    %730 = vst [vmem:[#allocation8 + $0xa8] sm:$0xff] %v650
    %731 = vst [vmem:[#allocation8 + $0xb0] sm:$0xff] %v701
    %732 = vst [vmem:[#allocation8 + $0xb8] sm:$0xff] %v703
    %733 = vst [vmem:[#allocation8 + $0xc0] sm:$0xff] %v546
    %734 = vst [vmem:[#allocation8 + $0xc8] sm:$0xff] %v548
    %735 = vst [vmem:[#allocation8 + $0xd0] sm:$0xff] %v599
    %736 = vst [vmem:[#allocation8 + $0xd8] sm:$0xff] %v601
    %737 = vst [vmem:[#allocation8 + $0xe0] sm:$0xff] %v652
    %738 = vst [vmem:[#allocation8 + $0xe8] sm:$0xff] %v654
    %739 = vst [vmem:[#allocation8 + $0xf0] sm:$0xff] %v705
    %740 = vst [vmem:[#allocation8 + $0xf8] sm:$0xff] %v707
    // Predicated region
    $region26: #{tpu_custom_call.1} parent=1 // pred_check
      _
    $region27: #{tpu_custom_call.1} parent=1 // pred_check_branch
      %742 = sbr.rel (0) target = $region29
    $region28: #{tpu_custom_call.1} parent=1 // pred_region
      %s744 = ssub.s32 4096, 4096
      %745 = vsyncadd [#allocation4], %s744
      %s746 = sshll.u32 [#allocation8], 4
      %s747 = int_to_ptr.vmem [resolvable:$true] %s746
      %752 = dma.vmem_to_hbm [thread:$0]  %s747, 4096, %s3, [#allocation4], 1024, 1024, 64
    $region29: #{tpu_custom_call.1} parent=1 // pred_fallthru
      _
    // Predicated region
    $region30: #{tpu_custom_call.1} parent=1 // pred_check
      _
    $region31: #{tpu_custom_call.1} parent=1 // pred_check_branch
      %754 = sbr.rel (0) target = $region33
    $region32: #{tpu_custom_call.1} parent=1 // pred_region
      %755 = dma.done [#allocation4], 4096
    $region33: #{tpu_custom_call.1} parent=1 // pred_fallthru
      _
    %756 = vsyncpa [#allocation3], 1
    %757 = vsyncpa [#allocation6], 1
    %758 = vsyncpa [#allocation4], 1

</llo_original>
